<compile_context>
chip_gen: v7x
topology: tpu7x:2x2x1
jax: 0.10.0
libtpu: 0.0.40
codegen_flags: <defaults>
</compile_context>

<pallas_src>
import numpy as np
import jax
import jax.numpy as jnp
from jax.experimental import pallas as pl
from jax.experimental.pallas import tpu as pltpu

# ----------------------------- synthetic SMPL dimensions --------------------
NUM_JOINTS = 24                       # 23 body joints + root (pelvis)
NUM_BETAS = 10
V = 128                               # synthetic vertex count (real SMPL: 6890)
JE = 9                                # rows of the synthetic J_regressor_extra
POSE_BASIS = (NUM_JOINTS - 1) * 9     # 207
BLEND_K = NUM_BETAS + POSE_BASIS + 1  # 218 : [betas | pose_feature | 1]
JE_PAD = 128                          # lane-dense padding for extra-joint output

PARENTS = np.array([-1, 0, 0, 0, 1, 2, 3, 4, 5, 6, 7, 8,
                    9, 9, 9, 12, 13, 14, 16, 17, 18, 19, 20, 21],
                   dtype=np.int32)
LEAF_VERTEX_IDS = np.array([11, 45, 95, 32, 67], dtype=np.int32)  # < V


# ----------------------------- fused Pallas kernel ----------------------------
def _smpl_fused_kernel(bp_ref, a12_ref, wblend_ref, wt_ref, bigjext_ref,
                       verts_ref, jext_ref):
    """Blendshapes + LBS skinning + extra-joint regression for one batch tile.

    bp_ref:      (TB, 218)     [betas | pose_feature | 1]
    a12_ref:     (12*TB, 24)   row (k*3 + c)*TB + b  holds A[b, :, c, k]
                               (top 3 rows of each relative 4x4 transform)
    wblend_ref:  (218, 3V)     [shapedirs ; posedirs ; v_template], lanes c*V+v
    wt_ref:      (24, V)       lbs_weights.T
    bigjext_ref: (3V, 128)     block-diagonal J_regressor_extra.T, zero-padded
    verts_ref:   (TB, 3V)      out, verts[b, c*V + v]
    jext_ref:    (TB, 128)     out, lanes [0, 3*JE) = extra joints [b, c*JE + e]
    """
    tb = bp_ref.shape[0]

    # Blendshapes (v_template folded in via the constant-1 column):
    #   vp[b, c*V + v] = v_posed coordinate c of vertex v.
    vp = jnp.dot(bp_ref[...], wblend_ref[...],
                 preferred_element_type=jnp.float32)            # (TB, 3V)

    # Per-vertex skinning transforms, batch folded into M:
    #   t12[(k*3+c)*TB + b, v] = sum_j W[v,j] * A[b,j,c,k]
    t12 = jnp.dot(a12_ref[...], wt_ref[...],
                  preferred_element_type=jnp.float32)           # (12*TB, V)

    # Homogeneous vertex transform, full (TB, V) tiles, lane-aligned slices.
    rows = []
    for c in range(3):
        r = (t12[(0 * 3 + c) * tb:(0 * 3 + c + 1) * tb, :] * vp[:, 0 * V:1 * V]
             + t12[(1 * 3 + c) * tb:(1 * 3 + c + 1) * tb, :] * vp[:, 1 * V:2 * V]
             + t12[(2 * 3 + c) * tb:(2 * 3 + c + 1) * tb, :] * vp[:, 2 * V:3 * V]
             + t12[(3 * 3 + c) * tb:(3 * 3 + c + 1) * tb, :])
        rows.append(r)                                          # (TB, V)
    verts = jnp.concatenate(rows, axis=1)                       # (TB, 3V)
    verts_ref[...] = verts

    # Extra-joint regression, lane-dense (TB, 128) output.
    jext_ref[...] = jnp.dot(verts, bigjext_ref[...],
                            preferred_element_type=jnp.float32)


def smpl_fused_call(bp, a12, params, *, tb, ntiles):
    out_shapes = (
        jax.ShapeDtypeStruct((ntiles * tb, 3 * V), jnp.float32),   # verts flat
        jax.ShapeDtypeStruct((ntiles * tb, JE_PAD), jnp.float32),  # extra joints
    )
    return pl.pallas_call(
        _smpl_fused_kernel,
        out_shape=out_shapes,
        grid=(ntiles,),
        in_specs=[
            pl.BlockSpec((tb, BLEND_K), lambda t: (t, 0)),
            pl.BlockSpec((12 * tb, NUM_JOINTS), lambda t: (t, 0)),
            pl.BlockSpec((BLEND_K, 3 * V), lambda t: (0, 0)),
            pl.BlockSpec((NUM_JOINTS, V), lambda t: (0, 0)),
            pl.BlockSpec((3 * V, JE_PAD), lambda t: (0, 0)),
        ],
        out_specs=(
            pl.BlockSpec((tb, 3 * V), lambda t: (t, 0)),
            pl.BlockSpec((tb, JE_PAD), lambda t: (t, 0)),
        ),
        compiler_params=pltpu.CompilerParams(
            dimension_semantics=("parallel",)),
    )(bp, a12, params["w_blend"], params["WT"], params["big_jext"])


# ----------------------------- plain-JAX glue --------------------------------
def euler_to_rotmat(euler):
    # TODO(synk): `euler_to_rot_mat` convention not provided in source; using
    # extrinsic X-Y-Z composition R = Rz @ Ry @ Rx.
    x, y, z = euler[..., 0], euler[..., 1], euler[..., 2]
    cx, sx = jnp.cos(x), jnp.sin(x)
    cy, sy = jnp.cos(y), jnp.sin(y)
    cz, sz = jnp.cos(z), jnp.sin(z)
    one, zero = jnp.ones_like(x), jnp.zeros_like(x)
    shp = euler.shape[:-1] + (3, 3)
    Rx = jnp.stack([one, zero, zero, zero, cx, -sx, zero, sx, cx], -1).reshape(shp)
    Ry = jnp.stack([cy, zero, sy, zero, one, zero, -sy, zero, cy], -1).reshape(shp)
    Rz = jnp.stack([cz, -sz, zero, sz, cz, zero, zero, zero, one], -1).reshape(shp)
    return jnp.matmul(Rz, jnp.matmul(Ry, Rx))


def batch_rigid_transform(rot_mats, joints, parents):
    # rot_mats: (B, 24, 3, 3), joints: (B, 24, 3) -- tiny sequential chain.
    B, J = joints.shape[0], joints.shape[1]
    rel_joints = joints.at[:, 1:].add(-joints[:, parents[1:]])
    t = rel_joints[..., None]                                      # (B,J,3,1)
    top = jnp.concatenate([rot_mats, t], axis=-1)                  # (B,J,3,4)
    bottom = jnp.broadcast_to(
        jnp.array([0.0, 0.0, 0.0, 1.0], dtype=rot_mats.dtype), (B, J, 1, 4))
    tmats = jnp.concatenate([top, bottom], axis=-2)                # (B,J,4,4)

    chains = [tmats[:, 0]]
    for i in range(1, J):
        chains.append(jnp.matmul(chains[int(parents[i])], tmats[:, i]))
    transforms = jnp.stack(chains, axis=1)                         # (B,J,4,4)

    posed_joints = transforms[:, :, :3, 3]                         # (B,J,3)
    jh = jnp.concatenate(
        [joints, jnp.zeros((B, J, 1), joints.dtype)], axis=-1)[..., None]
    init_bone = jnp.matmul(transforms, jh)                         # (B,J,4,1)
    rel_transforms = transforms - jnp.pad(
        init_bone, ((0, 0), (0, 0), (0, 0), (3, 0)))
    return posed_joints, rel_transforms


def _round_up(x, m):
    return ((x + m - 1) // m) * m


def smpl_forward(params, pose_angle, betas, transl=None, batch_tile=128):
    """pose_angle: (B, 72) euler angles, betas: (B, 10), transl: (B, 3)."""
    B = pose_angle.shape[0]
    # Batch tile = matmul M dimension; multiple of 8 (sublane aligned).
    # 128 fills the v5e MXU; use batch_tile=256 on v6e/v7x for large batches.
    # On v7x prefer >=2 batch tiles so both TensorCores get work.
    tb = min(_round_up(B, 8), batch_tile)
    bp_batch = _round_up(B, tb)
    ntiles = bp_batch // tb
    pad = bp_batch - B
    pose_p = jnp.pad(pose_angle, ((0, pad), (0, 0))) if pad else pose_angle
    betas_p = jnp.pad(betas, ((0, pad), (0, 0))) if pad else betas

    rot_mats = euler_to_rotmat(pose_p.reshape(bp_batch, NUM_JOINTS, 3))     # (BP,24,3,3)
    ident = jnp.eye(3, dtype=jnp.float32)
    pose_feature = (rot_mats[:, 1:] - ident).reshape(bp_batch, POSE_BASIS)  # (BP,207)

    # Rest joints via the precomputed J_regressor contraction (linear in v_shaped):
    #   J_regressor @ (v_template + shapedirs . betas) == J_template + betas @ J_shapedirs
    rest_J = params["J_template"][None] + jnp.einsum(
        "bs,sjc->bjc", betas_p, params["J_shapedirs"])                      # (BP,24,3)

    # Forward kinematics: 23 sequential 4x4 matmuls -- stays in plain JAX.
    posed_joints, A = batch_rigid_transform(rot_mats, rest_J, PARENTS)

    # Kernel inputs: [betas | pose_feature | 1] and the per-tile interleaved
    # relative transforms (only the top 3 rows of each 4x4 are needed).
    bp = jnp.concatenate(
        [betas_p, pose_feature, jnp.ones((bp_batch, 1), jnp.float32)], axis=1)
    a3 = A[:, :, :3, :]                                                     # (BP,24,3,4)
    a12 = a3.reshape(ntiles, tb, NUM_JOINTS, 3, 4).transpose(0, 4, 3, 1, 2)
    a12 = a12.reshape(ntiles * 12 * tb, NUM_JOINTS)                          # (12*BP,24)

    verts_flat, jext_flat = smpl_fused_call(bp, a12, params, tb=tb, ntiles=ntiles)

    vertices = verts_flat.reshape(bp_batch, 3, V).transpose(0, 2, 1)[:B]     # (B,V,3)
    joints_extra = (jext_flat[:, :3 * JE]
                    .reshape(bp_batch, 3, JE).transpose(0, 2, 1)[:B])        # (B,JE,3)
    posed_joints = posed_joints[:B]
    template_J = rest_J[:B]
    rot_mats = rot_mats[:B]

    leaf = vertices[:, LEAF_VERTEX_IDS]                                      # (B,5,3)
    joints = jnp.concatenate([posed_joints, leaf], axis=1)                   # (B,29,3)

    if transl is not None:
        vertices = vertices + transl[:, None, :]
        joints = joints + transl[:, None, :]
        joints_extra = joints_extra + transl[:, None, :]

    return dict(vertices=vertices, joints=joints, rot_mats=rot_mats,
                joints_from_verts_extra=joints_extra, template_J=template_J)


# ----------------------------- deterministic params --------------------------
def make_params():
    key = jax.random.PRNGKey(0)
    ks = jax.random.split(key, 8)
    v_template = 0.1 * jax.random.normal(ks[0], (V, 3), jnp.float32)
    shapedirs = 0.01 * jax.random.normal(ks[1], (V, 3, NUM_BETAS), jnp.float32)
    posedirs = 0.001 * jax.random.normal(ks[2], (V, 3, POSE_BASIS), jnp.float32)
    J_regressor = jax.random.uniform(ks[3], (NUM_JOINTS, V), jnp.float32)
    J_regressor = J_regressor / J_regressor.sum(-1, keepdims=True)
    J_regressor_extra = jax.random.uniform(ks[4], (JE, V), jnp.float32)
    J_regressor_extra = J_regressor_extra / J_regressor_extra.sum(-1, keepdims=True)
    lbs_weights = jax.random.uniform(ks[5], (V, NUM_JOINTS), jnp.float32)
    lbs_weights = lbs_weights / lbs_weights.sum(-1, keepdims=True)

    # Flattened coordinate-major blend weights: w[p, c*V + v].
    w_shape = jnp.transpose(shapedirs, (2, 1, 0)).reshape(NUM_BETAS, 3 * V)
    w_pose = jnp.transpose(posedirs, (2, 1, 0)).reshape(POSE_BASIS, 3 * V)
    w_tmpl = jnp.transpose(v_template, (1, 0)).reshape(1, 3 * V)
    w_blend = jnp.concatenate([w_shape, w_pose, w_tmpl], axis=0)          # (218, 3V)

    # Precomputed rest-joint regression (host side, done once).
    J_template = J_regressor @ v_template                                  # (24, 3)
    J_shapedirs = jnp.einsum("jv,vcs->sjc", J_regressor, shapedirs)        # (10, 24, 3)

    # Block-diagonal extra-joint regressor, zero-padded to 128 lanes.
    big = jnp.zeros((3, V, JE_PAD), jnp.float32)
    for c in range(3):
        big = big.at[c, :, c * JE:(c + 1) * JE].set(J_regressor_extra.T)
    big_jext = big.reshape(3 * V, JE_PAD)                                  # (3V, 128)

    return {
        "w_blend": w_blend,
        "WT": lbs_weights.T,                                               # (24, V)
        "big_jext": big_jext,
        "J_template": J_template,
        "J_shapedirs": J_shapedirs,
    }


# ----------------------------- main -------------------------------------------
if __name__ == "__main__":
    params = make_params()

    key = jax.random.PRNGKey(0)
    k1, k2, k3 = jax.random.split(key, 3)
    B = 2
    pose_angle = 0.2 * jax.random.normal(k1, (B, NUM_JOINTS * 3), jnp.float32)
    betas = jax.random.normal(k2, (B, NUM_BETAS), jnp.float32)
    transl = 0.1 * jax.random.normal(k3, (B, 3), jnp.float32)

    fwd = jax.jit(smpl_forward)
    out = fwd(params, pose_angle, betas, transl)
    jax.block_until_ready(out["vertices"])
    jax.block_until_ready(out["joints"])
    jax.block_until_ready(out["joints_from_verts_extra"])

    assert out["vertices"].shape == (B, V, 3)
    assert out["joints"].shape == (B, NUM_JOINTS + 5, 3)
    assert out["template_J"].shape == (B, NUM_JOINTS, 3)
    assert out["joints_from_verts_extra"].shape == (B, JE, 3)
    assert bool(jnp.all(jnp.isfinite(out["vertices"])))
    print("KERNEL_OK")
</pallas_src>

<mosaic_0001>
module attributes {stable_mosaic.version = 11 : i64} {
  func.func @_smpl_fused_kernel(%arg0: i32, %arg1: memref<8x218xf32, #tpu.memory_space<vmem>>, %arg2: memref<96x24xf32, #tpu.memory_space<vmem>>, %arg3: memref<218x384xf32, #tpu.memory_space<vmem>>, %arg4: memref<24x128xf32, #tpu.memory_space<vmem>>, %arg5: memref<384x128xf32, #tpu.memory_space<vmem>>, %arg6: memref<8x384xf32, #tpu.memory_space<vmem>>, %arg7: memref<8x128xf32, #tpu.memory_space<vmem>>) attributes {dimension_semantics = [#tpu.dimension_semantics<parallel>], iteration_bounds = array<i64: 1>, scalar_prefetch = 0 : i64, scratch_operands = 0 : i64, tpu.core_type = #tpu.core_type<tc>, window_params = [{transform_indices = @transform_0, window_bounds = array<i64: 8, 218>}, {transform_indices = @transform_1, window_bounds = array<i64: 96, 24>}, {pipeline_mode = #tpu.pipeline_mode<synchronous>, transform_indices = @transform_2, window_bounds = array<i64: 218, 384>}, {pipeline_mode = #tpu.pipeline_mode<synchronous>, transform_indices = @transform_3, window_bounds = array<i64: 24, 128>}, {pipeline_mode = #tpu.pipeline_mode<synchronous>, transform_indices = @transform_4, window_bounds = array<i64: 384, 128>}, {transform_indices = @transform_5, window_bounds = array<i64: 8, 384>}, {transform_indices = @transform_6, window_bounds = array<i64: 8, 128>}]} {
    %c0 = arith.constant 0 : index
    %c0_0 = arith.constant 0 : index
    %0 = vector.load %arg1[%c0, %c0_0] : memref<8x218xf32, #tpu.memory_space<vmem>>, vector<8x218xf32>
    %c0_1 = arith.constant 0 : index
    %c0_2 = arith.constant 0 : index
    %1 = vector.load %arg3[%c0_1, %c0_2] : memref<218x384xf32, #tpu.memory_space<vmem>>, vector<218x384xf32>
    %cst = arith.constant dense<0.000000e+00> : vector<8x384xf32>
    %2 = tpu.matmul %0, %1, %cst {dimension_numbers = #tpu.dot_dimension_numbers<[1], [0], [0], [1], [0, 0, 1, 1], [], []>} : vector<8x218xf32>, vector<218x384xf32>, vector<8x384xf32> -> vector<8x384xf32>
    %c0_3 = arith.constant 0 : index
    %c0_4 = arith.constant 0 : index
    %3 = vector.load %arg2[%c0_3, %c0_4] : memref<96x24xf32, #tpu.memory_space<vmem>>, vector<96x24xf32>
    %c0_5 = arith.constant 0 : index
    %c0_6 = arith.constant 0 : index
    %4 = vector.load %arg4[%c0_5, %c0_6] : memref<24x128xf32, #tpu.memory_space<vmem>>, vector<24x128xf32>
    %cst_7 = arith.constant dense<0.000000e+00> : vector<96x128xf32>
    %5 = tpu.matmul %3, %4, %cst_7 {dimension_numbers = #tpu.dot_dimension_numbers<[1], [0], [0], [1], [0, 0, 1, 1], [], []>} : vector<96x24xf32>, vector<24x128xf32>, vector<96x128xf32> -> vector<96x128xf32>
    %6 = vector.extract_strided_slice %5 {offsets = [0, 0], sizes = [8, 128], strides = [1, 1]} : vector<96x128xf32> to vector<8x128xf32>
    %7 = vector.extract_strided_slice %2 {offsets = [0, 0], sizes = [8, 128], strides = [1, 1]} : vector<8x384xf32> to vector<8x128xf32>
    %8 = arith.mulf %6, %7 : vector<8x128xf32>
    %9 = vector.extract_strided_slice %5 {offsets = [24, 0], sizes = [8, 128], strides = [1, 1]} : vector<96x128xf32> to vector<8x128xf32>
    %10 = vector.extract_strided_slice %2 {offsets = [0, 128], sizes = [8, 128], strides = [1, 1]} : vector<8x384xf32> to vector<8x128xf32>
    %11 = arith.mulf %9, %10 : vector<8x128xf32>
    %12 = arith.addf %8, %11 : vector<8x128xf32>
    %13 = vector.extract_strided_slice %5 {offsets = [48, 0], sizes = [8, 128], strides = [1, 1]} : vector<96x128xf32> to vector<8x128xf32>
    %14 = vector.extract_strided_slice %2 {offsets = [0, 256], sizes = [8, 128], strides = [1, 1]} : vector<8x384xf32> to vector<8x128xf32>
    %15 = arith.mulf %13, %14 : vector<8x128xf32>
    %16 = arith.addf %12, %15 : vector<8x128xf32>
    %17 = vector.extract_strided_slice %5 {offsets = [72, 0], sizes = [8, 128], strides = [1, 1]} : vector<96x128xf32> to vector<8x128xf32>
    %18 = arith.addf %16, %17 : vector<8x128xf32>
    %19 = vector.extract_strided_slice %5 {offsets = [8, 0], sizes = [8, 128], strides = [1, 1]} : vector<96x128xf32> to vector<8x128xf32>
    %20 = vector.extract_strided_slice %2 {offsets = [0, 0], sizes = [8, 128], strides = [1, 1]} : vector<8x384xf32> to vector<8x128xf32>
    %21 = arith.mulf %19, %20 : vector<8x128xf32>
    %22 = vector.extract_strided_slice %5 {offsets = [32, 0], sizes = [8, 128], strides = [1, 1]} : vector<96x128xf32> to vector<8x128xf32>
    %23 = vector.extract_strided_slice %2 {offsets = [0, 128], sizes = [8, 128], strides = [1, 1]} : vector<8x384xf32> to vector<8x128xf32>
    %24 = arith.mulf %22, %23 : vector<8x128xf32>
    %25 = arith.addf %21, %24 : vector<8x128xf32>
    %26 = vector.extract_strided_slice %5 {offsets = [56, 0], sizes = [8, 128], strides = [1, 1]} : vector<96x128xf32> to vector<8x128xf32>
    %27 = vector.extract_strided_slice %2 {offsets = [0, 256], sizes = [8, 128], strides = [1, 1]} : vector<8x384xf32> to vector<8x128xf32>
    %28 = arith.mulf %26, %27 : vector<8x128xf32>
    %29 = arith.addf %25, %28 : vector<8x128xf32>
    %30 = vector.extract_strided_slice %5 {offsets = [80, 0], sizes = [8, 128], strides = [1, 1]} : vector<96x128xf32> to vector<8x128xf32>
    %31 = arith.addf %29, %30 : vector<8x128xf32>
    %32 = vector.extract_strided_slice %5 {offsets = [16, 0], sizes = [8, 128], strides = [1, 1]} : vector<96x128xf32> to vector<8x128xf32>
    %33 = vector.extract_strided_slice %2 {offsets = [0, 0], sizes = [8, 128], strides = [1, 1]} : vector<8x384xf32> to vector<8x128xf32>
    %34 = arith.mulf %32, %33 : vector<8x128xf32>
    %35 = vector.extract_strided_slice %5 {offsets = [40, 0], sizes = [8, 128], strides = [1, 1]} : vector<96x128xf32> to vector<8x128xf32>
    %36 = vector.extract_strided_slice %2 {offsets = [0, 128], sizes = [8, 128], strides = [1, 1]} : vector<8x384xf32> to vector<8x128xf32>
    %37 = arith.mulf %35, %36 : vector<8x128xf32>
    %38 = arith.addf %34, %37 : vector<8x128xf32>
    %39 = vector.extract_strided_slice %5 {offsets = [64, 0], sizes = [8, 128], strides = [1, 1]} : vector<96x128xf32> to vector<8x128xf32>
    %40 = vector.extract_strided_slice %2 {offsets = [0, 256], sizes = [8, 128], strides = [1, 1]} : vector<8x384xf32> to vector<8x128xf32>
    %41 = arith.mulf %39, %40 : vector<8x128xf32>
    %42 = arith.addf %38, %41 : vector<8x128xf32>
    %43 = vector.extract_strided_slice %5 {offsets = [88, 0], sizes = [8, 128], strides = [1, 1]} : vector<96x128xf32> to vector<8x128xf32>
    %44 = arith.addf %42, %43 : vector<8x128xf32>
    %45 = tpu.concatenate %18, %31, %44 in 1 : vector<8x128xf32>, vector<8x128xf32>, vector<8x128xf32> -> vector<8x384xf32>
    %c0_8 = arith.constant 0 : index
    %c0_9 = arith.constant 0 : index
    %46 = vector.load %arg6[%c0_8, %c0_9] : memref<8x384xf32, #tpu.memory_space<vmem>>, vector<8x384xf32>
    tpu.vector_store %arg6[%c0_8, %c0_9], %45 {strides = array<i32>} : memref<8x384xf32, #tpu.memory_space<vmem>>, vector<8x384xf32>,
    %c0_10 = arith.constant 0 : index
    %c0_11 = arith.constant 0 : index
    %47 = vector.load %arg5[%c0_10, %c0_11] : memref<384x128xf32, #tpu.memory_space<vmem>>, vector<384x128xf32>
    %cst_12 = arith.constant dense<0.000000e+00> : vector<8x128xf32>
    %48 = tpu.matmul %45, %47, %cst_12 {dimension_numbers = #tpu.dot_dimension_numbers<[1], [0], [0], [1], [0, 0, 1, 1], [], []>} : vector<8x384xf32>, vector<384x128xf32>, vector<8x128xf32> -> vector<8x128xf32>
    %c0_13 = arith.constant 0 : index
    %c0_14 = arith.constant 0 : index
    %49 = vector.load %arg7[%c0_13, %c0_14] : memref<8x128xf32, #tpu.memory_space<vmem>>, vector<8x128xf32>
    tpu.vector_store %arg7[%c0_13, %c0_14], %48 {strides = array<i32>} : memref<8x128xf32, #tpu.memory_space<vmem>>, vector<8x128xf32>,
    return
  }
  func.func @transform_0(%arg0: i32) -> (i32, i32) {
    %c0_i32 = arith.constant 0 : i32
    %c0_i32_0 = arith.constant 0 : i32
    return %arg0, %c0_i32 : i32, i32
  }
  func.func @transform_1(%arg0: i32) -> (i32, i32) {
    %c0_i32 = arith.constant 0 : i32
    %c0_i32_0 = arith.constant 0 : i32
    return %arg0, %c0_i32 : i32, i32
  }
  func.func @transform_2(%arg0: i32) -> (i32, i32) {
    %c0_i32 = arith.constant 0 : i32
    %c0_i32_0 = arith.constant 0 : i32
    %c0_i32_1 = arith.constant 0 : i32
    return %c0_i32, %c0_i32_0 : i32, i32
  }
  func.func @transform_3(%arg0: i32) -> (i32, i32) {
    %c0_i32 = arith.constant 0 : i32
    %c0_i32_0 = arith.constant 0 : i32
    %c0_i32_1 = arith.constant 0 : i32
    return %c0_i32, %c0_i32_0 : i32, i32
  }
  func.func @transform_4(%arg0: i32) -> (i32, i32) {
    %c0_i32 = arith.constant 0 : i32
    %c0_i32_0 = arith.constant 0 : i32
    %c0_i32_1 = arith.constant 0 : i32
    return %c0_i32, %c0_i32_0 : i32, i32
  }
  func.func @transform_5(%arg0: i32) -> (i32, i32) {
    %c0_i32 = arith.constant 0 : i32
    %c0_i32_0 = arith.constant 0 : i32
    return %arg0, %c0_i32 : i32, i32
  }
  func.func @transform_6(%arg0: i32) -> (i32, i32) {
    %c0_i32 = arith.constant 0 : i32
    %c0_i32_0 = arith.constant 0 : i32
    return %arg0, %c0_i32 : i32, i32
  }
}

</mosaic_0001>

<llo_original>
// kernel: cos.2
$region0: #{cos.2}
  #allocation0 [shape = 's32[1]{0}', space=sflag, size = 0x4, scoped, tag = 'scoped memory for cos.2']
  %s0 = inlined_call_operand.vmem [shape: f32[8,24,1], index: 0, kind: input, shape index: {}]
  %s1 = inlined_call_operand.vmem [shape: bf16[8,24,1], index: 1, kind: output, shape index: {}]
  %v2 = vld [vmem:[%s0] sm:$0xff]
  %v3 = vand.u32 2147483647, %v2
  %vm4 = vcmp.le.f32.partialorder %v3, 0.7853982
  %vm5 = vcmp.lt.s32.totalorder %v2, 0
  %v6 = vand.u32 %v2, 2139095040
  %v7 = vshrl.u32 %v6, 23
  %v8 = vsub.s32 %v7, 127
  %v9 = vand.u32 2147483647, %v2
  %v10 = vand.u32 %v9, 8388607
  %v11 = vor.u32 %v10, 8388608
  %v12 = vsub.s32 0, %v11
  %v13 = vadd.s32 %v8, 1
  %vm14 = vcmp.gt.s32.totalorder %v13, 0
  %v15 = vsel %vm14, %v13, 0
  %v16 = vshrl.u32 %v15, 5
  %v17 = vand.u32 %v15, 31
  %v18 = vsub.s32 32, %v17
  %v19 = vshrl.u32 683565275, %v18
  %v20 = vshll.u32 683565275, %v17
  %v21 = vshrl.u32 2475754826, %v18
  %v22 = vor.u32 %v20, %v21
  %v23 = vshll.u32 2475754826, %v17
  %v24 = vshrl.u32 2131351028, %v18
  %v25 = vor.u32 %v23, %v24
  %v26 = vshll.u32 2131351028, %v17
  %v27 = vshrl.u32 2102212464, %v18
  %v28 = vor.u32 %v26, %v27
  %v29 = vshll.u32 2102212464, %v17
  %v30 = vshrl.u32 920167782, %v18
  %v31 = vor.u32 %v29, %v30
  %v32 = vshll.u32 920167782, %v17
  %v33 = vshrl.u32 1326507024, %v18
  %v34 = vor.u32 %v32, %v33
  %vm35 = vcmp.lt.s32.totalorder %v16, 1
  %vm36 = vcmp.lt.s32.totalorder %v16, 2
  %vm37 = vcmp.lt.s32.totalorder %v16, 3
  %vm38 = vcmp.lt.s32.totalorder %v16, 4
  %v39 = vsel %vm35, %v19, %v22
  %v40 = vsel %vm38, %v28, 2102212464
  %v41 = vsel %vm37, %v25, %v40
  %v42 = vsel %vm36, %v39, %v41
  %v43 = vsel %vm35, %v22, %v25
  %v44 = vsel %vm38, %v31, 920167782
  %v45 = vsel %vm37, %v28, %v44
  %v46 = vsel %vm36, %v43, %v45
  %v47 = vsel %vm35, %v25, %v28
  %v48 = vsel %vm38, %v34, 1326507024
  %v49 = vsel %vm37, %v31, %v48
  %v50 = vsel %vm36, %v47, %v49
  %v51 = vshll.u32 %v11, 8
  %v52 = vmul.u32.u64.compose %v51, %v50
  %v53 = vextract.low.u32 %v52
  %v54 = vextract.high.u32 %v52
  %v55 = vmul.u32.u64.compose %v51, %v46
  %v56 = vextract.low.u32 %v55
  %v57 = vextract.high.u32 %v55
  %v58 = vmul.u32 %v51, %v42
  %v59 = vadd.s32 %v54, %v56
  %vm60 = vc.u32 %v54, %v56
  %v61 = vadd.s32 %v57, 1
  %v62 = vsel %vm60, %v61, %v57
  %v63 = vadd.s32 %v58, %v62
  %v64 = vadd.s32 %v63, 536870912
  %v65 = vshrl.u32 %v64, 30
  %v66 = vshll.u32 %v65, 30
  %v67 = vsub.s32 %v63, %v66
  %vm68 = vcmp.lt.s32.totalorder %v67, 0
  %v69 = vsub.s32 0, %v67
  %v70 = vsel %vm68, %v69, %v67
  %v71 = vclz %v70
  %v72 = vsub.s32 %v71, 2
  %vm73 = vcmp.gt.s32.totalorder 0, %v72
  %v74 = vsel %vm73, 0, %v72
  %v75 = vsub.s32 32, %v74
  %v76 = vshll.u32 %v67, %v74
  %v77 = vshrl.u32 %v59, %v75
  %v78 = vor.u32 %v76, %v77
  %v79 = vsub.s32 4294967266, %v74
  %v80 = vadd.s32 %v79, 127
  %v81 = vshll.u32 %v80, 23
  %v82 = vor.u32 4788187, %v81
  %v83 = vand.u32 2147483647, %v82
  %v85 = vcvt.s32.f32 %v78
  %v86 = vmul.f32 %v85, %v83
  %v87 = vxor.u32 %v86, 2147483648
  %v88 = vsel %vm5, %v87, %v86
  %v89 = vsub.s32 4, %v65
  %v90 = vsel %vm5, %v89, %v65
  %v91 = vsel %vm4, %v2, %v88
  %v92 = vsel %vm4, 0, %v90
  %v93 = vcosq.f32.pop %v91
  %v94 = vsinq.f32.pop %v91
  %vm95 = vweird.f32 %v2
  %v96 = vand.u32 %v92, 3
  %vm97 = vcmp.lt.s32.totalorder %v96, 2
  %vm98 = vcmp.eq.s32.totalorder %v96, 0
  %v99 = vxor.u32 %v94, 2147483648
  %v100 = vsel %vm98, %v93, %v99
  %vm101 = vcmp.eq.s32.totalorder %v96, 2
  %v102 = vxor.u32 %v93, 2147483648
  %v103 = vsel %vm101, %v102, %v94
  %v104 = vsel %vm97, %v100, %v103
  %v105 = vsel %vm95, nan, %v104
  %v106 = vpack.c.bf16 0.0, %v105
  %107 = vst [vmem:[%s1] sm:$0xf] %v106

// kernel: sin.7
$region0: #{sin.7}
  #allocation0 [shape = 's32[1]{0}', space=sflag, size = 0x4, scoped, tag = 'scoped memory for sin.7']
  %s0 = inlined_call_operand.vmem [shape: f32[8,24,1], index: 0, kind: input, shape index: {}]
  %s1 = inlined_call_operand.vmem [shape: f32[8,24,1], index: 1, kind: output, shape index: {}]
  %v2 = vld [vmem:[%s0] sm:$0xff]
  %v3 = vand.u32 2147483647, %v2
  %vm4 = vcmp.le.f32.partialorder %v3, 0.7853982
  %vm5 = vcmp.lt.s32.totalorder %v2, 0
  %v6 = vand.u32 %v2, 2139095040
  %v7 = vshrl.u32 %v6, 23
  %v8 = vsub.s32 %v7, 127
  %v9 = vand.u32 2147483647, %v2
  %v10 = vand.u32 %v9, 8388607
  %v11 = vor.u32 %v10, 8388608
  %v12 = vsub.s32 0, %v11
  %v13 = vadd.s32 %v8, 1
  %vm14 = vcmp.gt.s32.totalorder %v13, 0
  %v15 = vsel %vm14, %v13, 0
  %v16 = vshrl.u32 %v15, 5
  %v17 = vand.u32 %v15, 31
  %v18 = vsub.s32 32, %v17
  %v19 = vshrl.u32 683565275, %v18
  %v20 = vshll.u32 683565275, %v17
  %v21 = vshrl.u32 2475754826, %v18
  %v22 = vor.u32 %v20, %v21
  %v23 = vshll.u32 2475754826, %v17
  %v24 = vshrl.u32 2131351028, %v18
  %v25 = vor.u32 %v23, %v24
  %v26 = vshll.u32 2131351028, %v17
  %v27 = vshrl.u32 2102212464, %v18
  %v28 = vor.u32 %v26, %v27
  %v29 = vshll.u32 2102212464, %v17
  %v30 = vshrl.u32 920167782, %v18
  %v31 = vor.u32 %v29, %v30
  %v32 = vshll.u32 920167782, %v17
  %v33 = vshrl.u32 1326507024, %v18
  %v34 = vor.u32 %v32, %v33
  %vm35 = vcmp.lt.s32.totalorder %v16, 1
  %vm36 = vcmp.lt.s32.totalorder %v16, 2
  %vm37 = vcmp.lt.s32.totalorder %v16, 3
  %vm38 = vcmp.lt.s32.totalorder %v16, 4
  %v39 = vsel %vm35, %v19, %v22
  %v40 = vsel %vm38, %v28, 2102212464
  %v41 = vsel %vm37, %v25, %v40
  %v42 = vsel %vm36, %v39, %v41
  %v43 = vsel %vm35, %v22, %v25
  %v44 = vsel %vm38, %v31, 920167782
  %v45 = vsel %vm37, %v28, %v44
  %v46 = vsel %vm36, %v43, %v45
  %v47 = vsel %vm35, %v25, %v28
  %v48 = vsel %vm38, %v34, 1326507024
  %v49 = vsel %vm37, %v31, %v48
  %v50 = vsel %vm36, %v47, %v49
  %v51 = vshll.u32 %v11, 8
  %v52 = vmul.u32.u64.compose %v51, %v50
  %v53 = vextract.low.u32 %v52
  %v54 = vextract.high.u32 %v52
  %v55 = vmul.u32.u64.compose %v51, %v46
  %v56 = vextract.low.u32 %v55
  %v57 = vextract.high.u32 %v55
  %v58 = vmul.u32 %v51, %v42
  %v59 = vadd.s32 %v54, %v56
  %vm60 = vc.u32 %v54, %v56
  %v61 = vadd.s32 %v57, 1
  %v62 = vsel %vm60, %v61, %v57
  %v63 = vadd.s32 %v58, %v62
  %v64 = vadd.s32 %v63, 536870912
  %v65 = vshrl.u32 %v64, 30
  %v66 = vshll.u32 %v65, 30
  %v67 = vsub.s32 %v63, %v66
  %vm68 = vcmp.lt.s32.totalorder %v67, 0
  %v69 = vsub.s32 0, %v67
  %v70 = vsel %vm68, %v69, %v67
  %v71 = vclz %v70
  %v72 = vsub.s32 %v71, 2
  %vm73 = vcmp.gt.s32.totalorder 0, %v72
  %v74 = vsel %vm73, 0, %v72
  %v75 = vsub.s32 32, %v74
  %v76 = vshll.u32 %v67, %v74
  %v77 = vshrl.u32 %v59, %v75
  %v78 = vor.u32 %v76, %v77
  %v79 = vsub.s32 4294967266, %v74
  %v80 = vadd.s32 %v79, 127
  %v81 = vshll.u32 %v80, 23
  %v82 = vor.u32 4788187, %v81
  %v83 = vand.u32 2147483647, %v82
  %v85 = vcvt.s32.f32 %v78
  %v86 = vmul.f32 %v85, %v83
  %v87 = vxor.u32 %v86, 2147483648
  %v88 = vsel %vm5, %v87, %v86
  %v89 = vsub.s32 4, %v65
  %v90 = vsel %vm5, %v89, %v65
  %v91 = vsel %vm4, %v2, %v88
  %v92 = vsel %vm4, 0, %v90
  %v93 = vcosq.f32.pop %v91
  %v94 = vsinq.f32.pop %v91
  %vm95 = vweird.f32 %v2
  %v96 = vadd.s32 %v92, 3
  %v97 = vand.u32 %v96, 3
  %vm98 = vcmp.lt.s32.totalorder %v97, 2
  %vm99 = vcmp.eq.s32.totalorder %v97, 0
  %v100 = vxor.u32 %v94, 2147483648
  %v101 = vsel %vm99, %v93, %v100
  %vm102 = vcmp.eq.s32.totalorder %v97, 2
  %v103 = vxor.u32 %v93, 2147483648
  %v104 = vsel %vm102, %v103, %v94
  %v105 = vsel %vm98, %v101, %v104
  %v106 = vsel %vm95, nan, %v105
  %107 = vst [vmem:[%s1] sm:$0xff] %v106

// kernel: smpl_forward.1
$region0: #{smpl_forward.1}
  #allocation0 [shape = 'u32[]', space=smem, size = 0x4, offset = 0x4, fixed_abs, tag = 'smem constant byte address 0x4 - core index']
  #allocation1 [shape = 'u32[144,128]{1,0:T(1,128)}', space=vmem, size = 0x12000, scoped, tag = 'internal scratch']
  %s0 = inlined_call_operand.vmem [shape: f32[8,218], index: 0, kind: input, shape index: {}]
  %s1 = inlined_call_operand.vmem [shape: f32[96,24], index: 1, kind: input, shape index: {}]
  %s2 = inlined_call_operand.vmem [shape: f32[218,384], index: 2, kind: input, shape index: {}]
  %s3 = inlined_call_operand.vmem [shape: f32[24,128], index: 3, kind: input, shape index: {}]
  %s4 = inlined_call_operand.vmem [shape: f32[384,128], index: 4, kind: input, shape index: {}]
  %s5 = inlined_call_operand.vmem [shape: f32[8,384], index: 5, kind: output, shape index: {0}]
  %s6 = inlined_call_operand.vmem [shape: f32[8,128], index: 6, kind: output, shape index: {1}]
  %7 = xla_tuple %s5, %s6
  %s8 = sld [smem:[#allocation0]]
  $region38: #{smpl_forward.1} parent=0
    _
  %s10 = ssub.s32 1, %s8
  %s11 = scalar_select 0, %s10, %s8
  // Predicated region
  $region2: #{smpl_forward.1} parent=0 // pred_check
    _
  $region3: #{smpl_forward.1} parent=0 // pred_check_branch
    %13 = sbr.rel (0) target = $region5
  $region4: #{smpl_forward.1} parent=0 // pred_region
    _
  $region5: #{smpl_forward.1} parent=0 // pred_fallthru
    _
  // Predicated region
  $region6: #{smpl_forward.1} parent=0 // pred_check
    _
  $region7: #{smpl_forward.1} parent=0 // pred_check_branch
    %15 = sbr.rel (0) target = $region9
  $region8: #{smpl_forward.1} parent=0 // pred_region
    _
  $region9: #{smpl_forward.1} parent=0 // pred_fallthru
    _
  // Predicated region
  $region10: #{smpl_forward.1} parent=0 // pred_check
    _
  $region11: #{smpl_forward.1} parent=0 // pred_check_branch
    %17 = sbr.rel (0) target = $region13
  $region12: #{smpl_forward.1} parent=0 // pred_region
    _
  $region13: #{smpl_forward.1} parent=0 // pred_fallthru
    _
  // Predicated region
  $region14: #{smpl_forward.1} parent=0 // pred_check
    _
  $region15: #{smpl_forward.1} parent=0 // pred_check_branch
    %19 = sbr.rel (0) target = $region17
  $region16: #{smpl_forward.1} parent=0 // pred_region
    _
  $region17: #{smpl_forward.1} parent=0 // pred_fallthru
    _
  // Predicated region
  $region18: #{smpl_forward.1} parent=0 // pred_check
    _
  $region19: #{smpl_forward.1} parent=0 // pred_check_branch
    %21 = sbr.rel (0) target = $region21
  $region20: #{smpl_forward.1} parent=0 // pred_region
    _
  $region21: #{smpl_forward.1} parent=0 // pred_fallthru
    _
  %v22 = vld [vmem:[%s0] sm:$0xff]
  %v23 = vld [vmem:[%s0 + $0x8] sm:$0xff]
  %v24 = vld [vmem:[%s2] sm:$0xff]
  %v25 = vld [vmem:[%s2 + $0x8] sm:$0xff]
  %v26 = vld [vmem:[%s2 + $0x10] sm:$0xff]
  %v27 = vld [vmem:[%s2 + $0x18] sm:$0xff]
  %v28 = vld [vmem:[%s2 + $0x20] sm:$0xff]
  %v29 = vld [vmem:[%s2 + $0x28] sm:$0xff]
  %v30 = vld [vmem:[%s2 + $0x30] sm:$0xff]
  %v31 = vld [vmem:[%s2 + $0x38] sm:$0xff]
  %v32 = vld [vmem:[%s2 + $0x40] sm:$0xff]
  %v33 = vld [vmem:[%s2 + $0x48] sm:$0xff]
  %v34 = vld [vmem:[%s2 + $0x50] sm:$0xff]
  %v35 = vld [vmem:[%s2 + $0x58] sm:$0xff]
  %v36 = vld [vmem:[%s2 + $0x60] sm:$0xff]
  %v37 = vld [vmem:[%s2 + $0x68] sm:$0xff]
  %v38 = vld [vmem:[%s2 + $0x70] sm:$0xff]
  %v39 = vld [vmem:[%s2 + $0x78] sm:$0xff]
  %v40 = vld [vmem:[%s2 + $0x80] sm:$0xff]
  %v41 = vld [vmem:[%s2 + $0x88] sm:$0xff]
  %v42 = vld [vmem:[%s2 + $0x90] sm:$0xff]
  %v43 = vld [vmem:[%s2 + $0x98] sm:$0xff]
  %v44 = vld [vmem:[%s2 + $0xa0] sm:$0xff]
  %v45 = vld [vmem:[%s2 + $0xa8] sm:$0xff]
  %v46 = vld [vmem:[%s2 + $0xb0] sm:$0xff]
  %v47 = vld [vmem:[%s2 + $0xb8] sm:$0xff]
  %v48 = vld [vmem:[%s2 + $0xc0] sm:$0xff]
  %v49 = vld [vmem:[%s2 + $0xc8] sm:$0xff]
  %v50 = vld [vmem:[%s2 + $0xd0] sm:$0xff]
  %v51 = vld [vmem:[%s2 + $0xd8] sm:$0xff]
  %v52 = vld [vmem:[%s2 + $0xe0] sm:$0xff]
  %v53 = vld [vmem:[%s2 + $0xe8] sm:$0xff]
  %v54 = vld [vmem:[%s2 + $0xf0] sm:$0xff]
  %v55 = vld [vmem:[%s2 + $0xf8] sm:$0xff]
  %v56 = vld [vmem:[%s2 + $0x100] sm:$0xff]
  %v57 = vld [vmem:[%s2 + $0x108] sm:$0xff]
  %v58 = vld [vmem:[%s2 + $0x110] sm:$0xff]
  %v59 = vld [vmem:[%s2 + $0x118] sm:$0xff]
  %v60 = vld [vmem:[%s2 + $0x120] sm:$0xff]
  %v61 = vld [vmem:[%s2 + $0x128] sm:$0xff]
  %v62 = vld [vmem:[%s2 + $0x130] sm:$0xff]
  %v63 = vld [vmem:[%s2 + $0x138] sm:$0xff]
  %v64 = vld [vmem:[%s2 + $0x140] sm:$0xff]
  %v65 = vld [vmem:[%s2 + $0x148] sm:$0xff]
  %v66 = vld [vmem:[%s2 + $0x150] sm:$0xff]
  %v67 = vld [vmem:[%s2 + $0x158] sm:$0xff]
  %v68 = vld [vmem:[%s2 + $0x160] sm:$0xff]
  %v69 = vld [vmem:[%s2 + $0x168] sm:$0xff]
  %v70 = vld [vmem:[%s2 + $0x170] sm:$0xff]
  %v71 = vld [vmem:[%s2 + $0x178] sm:$0xff]
  %v72 = vld [vmem:[%s2 + $0x180] sm:$0xff]
  %v73 = vld [vmem:[%s2 + $0x188] sm:$0xff]
  %v74 = vld [vmem:[%s2 + $0x190] sm:$0xff]
  %v75 = vld [vmem:[%s2 + $0x198] sm:$0xff]
  %v76 = vld [vmem:[%s2 + $0x1a0] sm:$0xff]
  %v77 = vld [vmem:[%s2 + $0x1a8] sm:$0xff]
  %v78 = vld [vmem:[%s2 + $0x1b0] sm:$0xff]
  %v79 = vld [vmem:[%s2 + $0x1b8] sm:$0xff]
  %v80 = vld [vmem:[%s2 + $0x1c0] sm:$0xff]
  %v81 = vld [vmem:[%s2 + $0x1c8] sm:$0xff]
  %v82 = vld [vmem:[%s2 + $0x1d0] sm:$0xff]
  %v83 = vld [vmem:[%s2 + $0x1d8] sm:$0xff]
  %v84 = vld [vmem:[%s2 + $0x1e0] sm:$0xff]
  %v85 = vld [vmem:[%s2 + $0x1e8] sm:$0xff]
  %v86 = vld [vmem:[%s2 + $0x1f0] sm:$0xff]
  %v87 = vld [vmem:[%s2 + $0x1f8] sm:$0xff]
  %v88 = vld [vmem:[%s2 + $0x200] sm:$0xff]
  %v89 = vld [vmem:[%s2 + $0x208] sm:$0xff]
  %v90 = vld [vmem:[%s2 + $0x210] sm:$0xff]
  %v91 = vld [vmem:[%s2 + $0x218] sm:$0xff]
  %v92 = vld [vmem:[%s2 + $0x220] sm:$0xff]
  %v93 = vld [vmem:[%s2 + $0x228] sm:$0xff]
  %v94 = vld [vmem:[%s2 + $0x230] sm:$0xff]
  %v95 = vld [vmem:[%s2 + $0x238] sm:$0xff]
  %v96 = vld [vmem:[%s2 + $0x240] sm:$0xff]
  %v97 = vld [vmem:[%s2 + $0x248] sm:$0xff]
  %v98 = vld [vmem:[%s2 + $0x250] sm:$0xff]
  %v99 = vld [vmem:[%s2 + $0x258] sm:$0xff]
  %v100 = vld [vmem:[%s2 + $0x260] sm:$0xff]
  %v101 = vld [vmem:[%s2 + $0x268] sm:$0xff]
  %v102 = vld [vmem:[%s2 + $0x270] sm:$0xff]
  %v103 = vld [vmem:[%s2 + $0x278] sm:$0xff]
  %v104 = vld [vmem:[%s2 + $0x280] sm:$0xff]
  %v105 = vld [vmem:[%s2 + $0x288] sm:$0x3]
  %v106 = vld [vmem:[%s2 + $0x290] sm:$0x3]
  %v107 = vld [vmem:[%s2 + $0x298] sm:$0x3]
  %vm108 = vcmask 736256
  %v110 = vsel %vm108, %v23, 0
  %vm112 = vcmask 1041408
  %v114 = vsel %vm112, %v105, 0
  %v117 = vsel %vm112, %v106, 0
  %v120 = vsel %vm112, %v107, 0
  %122 = vmatprep.subr.mxu0 %v25
  %123 = vmatpush1.msra.mxu0 %v24
  %124 = vmatprep.subr.mxu0 %v28
  %125 = vmatpush1.msra.mxu0 %v27
  %126 = vmatprep.subr.mxu0 %v31
  %127 = vmatpush1.msra.mxu0 %v30
  %128 = vmatprep.subr.mxu0 %v34
  %129 = vmatpush1.msra.mxu0 %v33
  %130 = vmatprep.subr.mxu0 %v37
  %131 = vmatpush1.msra.mxu0 %v36
  %132 = vmatprep.subr.mxu0 %v40
  %133 = vmatpush1.msra.mxu0 %v39
  %134 = vmatprep.subr.mxu0 %v43
  %135 = vmatpush1.msra.mxu0 %v42
  %136 = vmatprep.subr.mxu0 %v46
  %137 = vmatpush1.msra.mxu0 %v45
  %138 = vmatprep.subr.mxu0 %v49
  %139 = vmatpush1.msra.mxu0 %v48
  %140 = vmatprep.subr.mxu0 %v52
  %141 = vmatpush1.msra.mxu0 %v51
  %142 = vmatprep.subr.mxu0 %v55
  %143 = vmatpush1.msra.mxu0 %v54
  %144 = vmatprep.subr.mxu0 %v58
  %145 = vmatpush1.msra.mxu0 %v57
  %146 = vmatprep.subr.mxu0 %v61
  %147 = vmatpush1.msra.mxu0 %v60
  %148 = vmatprep.subr.mxu0 %v64
  %149 = vmatpush1.msra.mxu0 %v63
  %150 = vmatprep.subr.mxu0 %v67
  %151 = vmatpush1.msra.mxu0 %v66
  %152 = vmatprep.subr.mxu0 %v70
  %153 = vmatpush1.msra.mxu0 %v69
  %154 = vmatprep.subr.mxu0 %v73
  %155 = vmatpush1.msra.mxu0 %v72
  %156 = vmatprep.subr.mxu0 %v76
  %157 = vmatpush1.msra.mxu0 %v75
  %158 = vmatprep.subr.mxu0 %v79
  %159 = vmatpush1.msra.mxu0 %v78
  %160 = vmatprep.subr.mxu0 %v82
  %161 = vmatpush1.msra.mxu0 %v81
  %162 = vmatprep.subr.mxu0 %v85
  %163 = vmatpush1.msra.mxu0 %v84
  %164 = vmatprep.subr.mxu0 %v88
  %165 = vmatpush1.msra.mxu0 %v87
  %166 = vmatprep.subr.mxu0 %v91
  %167 = vmatpush1.msra.mxu0 %v90
  %168 = vmatprep.subr.mxu0 %v94
  %169 = vmatpush1.msra.mxu0 %v93
  %170 = vmatprep.subr.mxu0 %v97
  %171 = vmatpush1.msra.mxu0 %v96
  %172 = vmatprep.subr.mxu0 %v100
  %173 = vmatpush1.msra.mxu0 %v99
  %174 = vmatprep.subr.mxu0 %v103
  %175 = vmatpush1.msra.mxu0 %v102
  %176 = vmatprep.subr.mxu0 %v117
  %177 = vmatpush1.msra.mxu0 %v114
  %178 = vmatprep.subr.mxu0 0.0
  %179 = vmatpush1.msra.mxu0 0.0
  %180 = vmatprep.subr.mxu0 0.0
  %181 = vmatpush1.msra.mxu0 0.0
  %182 = vmatprep.subr.mxu0 0.0
  %183 = vmatpush1.msra.mxu0 0.0
  %184 = vmatprep.subr.mxu0 0.0
  %185 = vmatpush1.msra.mxu0 0.0
  %186 = vmatprep.mubr.f32.mxu0 %v110
  %187 = vmatmul.mubr.f32.gmra.mrb[0].mxu0 %v22
  %v188 = vpop.f32.mrb[0].mxu0
  %v189 = vadd.f32 0.0, %v188
  %v190 = vpop.f32.mrb[0].mxu0
  %v191 = vadd.f32 0.0, %v190
  %192 = vdwg.mxu0
  %193 = vmatprep.subr.mxu0 0.0
  %194 = vmatpush1.msra.mxu0 %v26
  %195 = vmatprep.subr.mxu0 0.0
  %196 = vmatpush1.msra.mxu0 %v29
  %197 = vmatprep.subr.mxu0 0.0
  %198 = vmatpush1.msra.mxu0 %v32
  %199 = vmatprep.subr.mxu0 0.0
  %200 = vmatpush1.msra.mxu0 %v35
  %201 = vmatprep.subr.mxu0 0.0
  %202 = vmatpush1.msra.mxu0 %v38
  %203 = vmatprep.subr.mxu0 0.0
  %204 = vmatpush1.msra.mxu0 %v41
  %205 = vmatprep.subr.mxu0 0.0
  %206 = vmatpush1.msra.mxu0 %v44
  %207 = vmatprep.subr.mxu0 0.0
  %208 = vmatpush1.msra.mxu0 %v47
  %209 = vmatprep.subr.mxu0 0.0
  %210 = vmatpush1.msra.mxu0 %v50
  %211 = vmatprep.subr.mxu0 0.0
  %212 = vmatpush1.msra.mxu0 %v53
  %213 = vmatprep.subr.mxu0 0.0
  %214 = vmatpush1.msra.mxu0 %v56
  %215 = vmatprep.subr.mxu0 0.0
  %216 = vmatpush1.msra.mxu0 %v59
  %217 = vmatprep.subr.mxu0 0.0
  %218 = vmatpush1.msra.mxu0 %v62
  %219 = vmatprep.subr.mxu0 0.0
  %220 = vmatpush1.msra.mxu0 %v65
  %221 = vmatprep.subr.mxu0 0.0
  %222 = vmatpush1.msra.mxu0 %v68
  %223 = vmatprep.subr.mxu0 0.0
  %224 = vmatpush1.msra.mxu0 %v71
  %225 = vmatprep.subr.mxu0 0.0
  %226 = vmatpush1.msra.mxu0 %v74
  %227 = vmatprep.subr.mxu0 0.0
  %228 = vmatpush1.msra.mxu0 %v77
  %229 = vmatprep.subr.mxu0 0.0
  %230 = vmatpush1.msra.mxu0 %v80
  %231 = vmatprep.subr.mxu0 0.0
  %232 = vmatpush1.msra.mxu0 %v83
  %233 = vmatprep.subr.mxu0 0.0
  %234 = vmatpush1.msra.mxu0 %v86
  %235 = vmatprep.subr.mxu0 0.0
  %236 = vmatpush1.msra.mxu0 %v89
  %237 = vmatprep.subr.mxu0 0.0
  %238 = vmatpush1.msra.mxu0 %v92
  %239 = vmatprep.subr.mxu0 0.0
  %240 = vmatpush1.msra.mxu0 %v95
  %241 = vmatprep.subr.mxu0 0.0
  %242 = vmatpush1.msra.mxu0 %v98
  %243 = vmatprep.subr.mxu0 0.0
  %244 = vmatpush1.msra.mxu0 %v101
  %245 = vmatprep.subr.mxu0 0.0
  %246 = vmatpush1.msra.mxu0 %v104
  %247 = vmatprep.subr.mxu0 0.0
  %248 = vmatpush1.msra.mxu0 %v120
  %249 = vmatprep.subr.mxu0 0.0
  %250 = vmatpush1.msra.mxu0 0.0
  %251 = vmatprep.subr.mxu0 0.0
  %252 = vmatpush1.msra.mxu0 0.0
  %253 = vmatprep.subr.mxu0 0.0
  %254 = vmatpush1.msra.mxu0 0.0
  %255 = vmatprep.subr.mxu0 0.0
  %256 = vmatpush1.msra.mxu0 0.0
  %257 = vmatprep.mubr.f32.mxu0 %v110
  %258 = vmatmul.mubr.f32.gmra.mrb[0].mxu0 %v22
  %v259 = vpop.f32.mrb[0].mxu0
  %v260 = vadd.f32 0.0, %v259
  %v261 = vpop.f32.mrb[0].mxu0
  %262 = vdwg.mxu0
  %v263 = vld [vmem:[%s1] sm:$0xff]
  %v264 = vld [vmem:[%s1 + $0x8] sm:$0xff]
  %v265 = vld [vmem:[%s1 + $0x10] sm:$0xff]
  %v266 = vld [vmem:[%s1 + $0x18] sm:$0xff]
  %v267 = vld [vmem:[%s1 + $0x20] sm:$0xff]
  %v268 = vld [vmem:[%s1 + $0x28] sm:$0xff]
  %v269 = vld [vmem:[%s1 + $0x30] sm:$0xff]
  %v270 = vld [vmem:[%s1 + $0x38] sm:$0xff]
  %v271 = vld [vmem:[%s1 + $0x40] sm:$0xff]
  %v272 = vld [vmem:[%s1 + $0x48] sm:$0xff]
  %v273 = vld [vmem:[%s1 + $0x50] sm:$0xff]
  %v274 = vld [vmem:[%s1 + $0x58] sm:$0xff]
  %v275 = vld [vmem:[%s3] sm:$0xff]
  %v276 = vld [vmem:[%s3 + $0x8] sm:$0xff]
  %v277 = vld [vmem:[%s3 + $0x10] sm:$0xff]
  %vm278 = vcmask 195584
  %v280 = vsel %vm278, %v263, 0
  %v283 = vsel %vm278, %v264, 0
  %v286 = vsel %vm278, %v265, 0
  %v289 = vsel %vm278, %v266, 0
  %v292 = vsel %vm278, %v267, 0
  %v295 = vsel %vm278, %v268, 0
  %v298 = vsel %vm278, %v269, 0
  %v301 = vsel %vm278, %v270, 0
  %v304 = vsel %vm278, %v271, 0
  %v307 = vsel %vm278, %v272, 0
  %v310 = vsel %vm278, %v273, 0
  %v313 = vsel %vm278, %v274, 0
  %315 = vmatprep.subr.mxu0 0.0
  %316 = vmatpush1.msra.mxu0 %v275
  %317 = vmatprep.subr.mxu0 0.0
  %318 = vmatpush1.msra.mxu0 %v276
  %319 = vmatprep.subr.mxu0 0.0
  %320 = vmatpush1.msra.mxu0 %v277
  %321 = vmatprep.subr.mxu0 0.0
  %322 = vmatpush1.msra.mxu0 0.0
  %323 = vmatprep.subr.mxu0 0.0
  %324 = vmatpush1.msra.mxu0 0.0
  %325 = vmatprep.subr.mxu0 0.0
  %326 = vmatpush1.msra.mxu0 0.0
  %327 = vmatprep.subr.mxu0 0.0
  %328 = vmatpush1.msra.mxu0 0.0
  %329 = vmatprep.subr.mxu0 0.0
  %330 = vmatpush1.msra.mxu0 0.0
  %331 = vmatprep.subr.mxu0 0.0
  %332 = vmatpush1.msra.mxu0 0.0
  %333 = vmatprep.subr.mxu0 0.0
  %334 = vmatpush1.msra.mxu0 0.0
  %335 = vmatprep.subr.mxu0 0.0
  %336 = vmatpush1.msra.mxu0 0.0
  %337 = vmatprep.subr.mxu0 0.0
  %338 = vmatpush1.msra.mxu0 0.0
  %339 = vmatprep.subr.mxu0 0.0
  %340 = vmatpush1.msra.mxu0 0.0
  %341 = vmatprep.subr.mxu0 0.0
  %342 = vmatpush1.msra.mxu0 0.0
  %343 = vmatprep.subr.mxu0 0.0
  %344 = vmatpush1.msra.mxu0 0.0
  %345 = vmatprep.subr.mxu0 0.0
  %346 = vmatpush1.msra.mxu0 0.0
  %347 = vmatprep.subr.mxu0 0.0
  %348 = vmatpush1.msra.mxu0 0.0
  %349 = vmatprep.subr.mxu0 0.0
  %350 = vmatpush1.msra.mxu0 0.0
  %351 = vmatprep.subr.mxu0 0.0
  %352 = vmatpush1.msra.mxu0 0.0
  %353 = vmatprep.subr.mxu0 0.0
  %354 = vmatpush1.msra.mxu0 0.0
  %355 = vmatprep.subr.mxu0 0.0
  %356 = vmatpush1.msra.mxu0 0.0
  %357 = vmatprep.subr.mxu0 0.0
  %358 = vmatpush1.msra.mxu0 0.0
  %359 = vmatprep.subr.mxu0 0.0
  %360 = vmatpush1.msra.mxu0 0.0
  %361 = vmatprep.subr.mxu0 0.0
  %362 = vmatpush1.msra.mxu0 0.0
  %363 = vmatprep.subr.mxu0 0.0
  %364 = vmatpush1.msra.mxu0 0.0
  %365 = vmatprep.subr.mxu0 0.0
  %366 = vmatpush1.msra.mxu0 0.0
  %367 = vmatprep.subr.mxu0 0.0
  %368 = vmatpush1.msra.mxu0 0.0
  %369 = vmatprep.subr.mxu0 0.0
  %370 = vmatpush1.msra.mxu0 0.0
  %371 = vmatprep.subr.mxu0 0.0
  %372 = vmatpush1.msra.mxu0 0.0
  %373 = vmatprep.subr.mxu0 0.0
  %374 = vmatpush1.msra.mxu0 0.0
  %375 = vmatprep.subr.mxu0 0.0
  %376 = vmatpush1.msra.mxu0 0.0
  %377 = vmatprep.subr.mxu0 0.0
  %378 = vmatpush1.msra.mxu0 0.0
  %379 = vmatprep.mubr.f32.mxu0 0.0
  %380 = vmatmul.mubr.f32.gmra.mrb[0].mxu0 %v280
  %v381 = vpop.f32.mrb[0].mxu0
  %v382 = vadd.f32 0.0, %v381
  %v383 = vpop.f32.mrb[0].mxu0
  %384 = vmatprep.mubr.f32.mxu0 0.0
  %385 = vmatmul.mubr.f32.gmra.mrb[0].mxu0 %v283
  %v386 = vpop.f32.mrb[0].mxu0
  %v387 = vadd.f32 0.0, %v386
  %v388 = vpop.f32.mrb[0].mxu0
  %389 = vmatprep.mubr.f32.mxu0 0.0
  %390 = vmatmul.mubr.f32.gmra.mrb[0].mxu0 %v286
  %v391 = vpop.f32.mrb[0].mxu0
  %v392 = vadd.f32 0.0, %v391
  %v393 = vpop.f32.mrb[0].mxu0
  %394 = vmatprep.mubr.f32.mxu0 0.0
  %395 = vmatmul.mubr.f32.gmra.mrb[0].mxu0 %v289
  %v396 = vpop.f32.mrb[0].mxu0
  %v397 = vadd.f32 0.0, %v396
  %v398 = vpop.f32.mrb[0].mxu0
  %399 = vmatprep.mubr.f32.mxu0 0.0
  %400 = vmatmul.mubr.f32.gmra.mrb[0].mxu0 %v292
  %v401 = vpop.f32.mrb[0].mxu0
  %v402 = vadd.f32 0.0, %v401
  %v403 = vpop.f32.mrb[0].mxu0
  %404 = vmatprep.mubr.f32.mxu0 0.0
  %405 = vmatmul.mubr.f32.gmra.mrb[0].mxu0 %v295
  %v406 = vpop.f32.mrb[0].mxu0
  %v407 = vadd.f32 0.0, %v406
  %v408 = vpop.f32.mrb[0].mxu0
  %409 = vmatprep.mubr.f32.mxu0 0.0
  %410 = vmatmul.mubr.f32.gmra.mrb[0].mxu0 %v298
  %v411 = vpop.f32.mrb[0].mxu0
  %v412 = vadd.f32 0.0, %v411
  %v413 = vpop.f32.mrb[0].mxu0
  %414 = vmatprep.mubr.f32.mxu0 0.0
  %415 = vmatmul.mubr.f32.gmra.mrb[0].mxu0 %v301
  %v416 = vpop.f32.mrb[0].mxu0
  %v417 = vadd.f32 0.0, %v416
  %v418 = vpop.f32.mrb[0].mxu0
  %419 = vmatprep.mubr.f32.mxu0 0.0
  %420 = vmatmul.mubr.f32.gmra.mrb[0].mxu0 %v304
  %v421 = vpop.f32.mrb[0].mxu0
  %v422 = vadd.f32 0.0, %v421
  %v423 = vpop.f32.mrb[0].mxu0
  %424 = vmatprep.mubr.f32.mxu0 0.0
  %425 = vmatmul.mubr.f32.gmra.mrb[0].mxu0 %v307
  %v426 = vpop.f32.mrb[0].mxu0
  %v427 = vadd.f32 0.0, %v426
  %v428 = vpop.f32.mrb[0].mxu0
  %429 = vmatprep.mubr.f32.mxu0 0.0
  %430 = vmatmul.mubr.f32.gmra.mrb[0].mxu0 %v310
  %v431 = vpop.f32.mrb[0].mxu0
  %v432 = vadd.f32 0.0, %v431
  %v433 = vpop.f32.mrb[0].mxu0
  %434 = vmatprep.mubr.f32.mxu0 0.0
  %435 = vmatmul.mubr.f32.gmra.mrb[0].mxu0 %v313
  %v436 = vpop.f32.mrb[0].mxu0
  %v437 = vadd.f32 0.0, %v436
  %v438 = vpop.f32.mrb[0].mxu0
  %439 = vdwg.mxu0
  %v440 = vmul.f32 %v382, %v189
  %v441 = vmul.f32 %v397, %v191
  %v442 = vadd.f32 %v440, %v441
  %v443 = vmul.f32 %v412, %v260
  %v444 = vadd.f32 %v442, %v443
  %v445 = vadd.f32 %v444, %v427
  %v446 = vmul.f32 %v387, %v189
  %v447 = vmul.f32 %v402, %v191
  %v448 = vadd.f32 %v446, %v447
  %v449 = vmul.f32 %v417, %v260
  %v450 = vadd.f32 %v448, %v449
  %v451 = vadd.f32 %v450, %v432
  %v452 = vmul.f32 %v392, %v189
  %v453 = vmul.f32 %v407, %v191
  %v454 = vadd.f32 %v452, %v453
  %v455 = vmul.f32 %v422, %v260
  %v456 = vadd.f32 %v454, %v455
  %v457 = vadd.f32 %v456, %v437
  %458 = vst [vmem:[%s5] sm:$0xff] %v445
  %459 = vst [vmem:[%s5 + $0x8] sm:$0xff] %v451
  %460 = vst [vmem:[%s5 + $0x10] sm:$0xff] %v457
  %v461 = vld [vmem:[%s4] sm:$0xff]
  %v462 = vld [vmem:[%s4 + $0x8] sm:$0xff]
  %v463 = vld [vmem:[%s4 + $0x10] sm:$0xff]
  %v464 = vld [vmem:[%s4 + $0x18] sm:$0xff]
  %v465 = vld [vmem:[%s4 + $0x20] sm:$0xff]
  %v466 = vld [vmem:[%s4 + $0x28] sm:$0xff]
  %v467 = vld [vmem:[%s4 + $0x30] sm:$0xff]
  %v468 = vld [vmem:[%s4 + $0x38] sm:$0xff]
  %v469 = vld [vmem:[%s4 + $0x40] sm:$0xff]
  %v470 = vld [vmem:[%s4 + $0x48] sm:$0xff]
  %v471 = vld [vmem:[%s4 + $0x50] sm:$0xff]
  %v472 = vld [vmem:[%s4 + $0x58] sm:$0xff]
  %v473 = vld [vmem:[%s4 + $0x60] sm:$0xff]
  %v474 = vld [vmem:[%s4 + $0x68] sm:$0xff]
  %v475 = vld [vmem:[%s4 + $0x70] sm:$0xff]
  %v476 = vld [vmem:[%s4 + $0x78] sm:$0xff]
  %v477 = vld [vmem:[%s4 + $0x80] sm:$0xff]
  %v478 = vld [vmem:[%s4 + $0x88] sm:$0xff]
  %v479 = vld [vmem:[%s4 + $0x90] sm:$0xff]
  %v480 = vld [vmem:[%s4 + $0x98] sm:$0xff]
  %v481 = vld [vmem:[%s4 + $0xa0] sm:$0xff]
  %v482 = vld [vmem:[%s4 + $0xa8] sm:$0xff]
  %v483 = vld [vmem:[%s4 + $0xb0] sm:$0xff]
  %v484 = vld [vmem:[%s4 + $0xb8] sm:$0xff]
  %v485 = vld [vmem:[%s4 + $0xc0] sm:$0xff]
  %v486 = vld [vmem:[%s4 + $0xc8] sm:$0xff]
  %v487 = vld [vmem:[%s4 + $0xd0] sm:$0xff]
  %v488 = vld [vmem:[%s4 + $0xd8] sm:$0xff]
  %v489 = vld [vmem:[%s4 + $0xe0] sm:$0xff]
  %v490 = vld [vmem:[%s4 + $0xe8] sm:$0xff]
  %v491 = vld [vmem:[%s4 + $0xf0] sm:$0xff]
  %v492 = vld [vmem:[%s4 + $0xf8] sm:$0xff]
  %v493 = vld [vmem:[%s4 + $0x100] sm:$0xff]
  %v494 = vld [vmem:[%s4 + $0x108] sm:$0xff]
  %v495 = vld [vmem:[%s4 + $0x110] sm:$0xff]
  %v496 = vld [vmem:[%s4 + $0x118] sm:$0xff]
  %v497 = vld [vmem:[%s4 + $0x120] sm:$0xff]
  %v498 = vld [vmem:[%s4 + $0x128] sm:$0xff]
  %v499 = vld [vmem:[%s4 + $0x130] sm:$0xff]
  %v500 = vld [vmem:[%s4 + $0x138] sm:$0xff]
  %v501 = vld [vmem:[%s4 + $0x140] sm:$0xff]
  %v502 = vld [vmem:[%s4 + $0x148] sm:$0xff]
  %v503 = vld [vmem:[%s4 + $0x150] sm:$0xff]
  %v504 = vld [vmem:[%s4 + $0x158] sm:$0xff]
  %v505 = vld [vmem:[%s4 + $0x160] sm:$0xff]
  %v506 = vld [vmem:[%s4 + $0x168] sm:$0xff]
  %v507 = vld [vmem:[%s4 + $0x170] sm:$0xff]
  %v508 = vld [vmem:[%s4 + $0x178] sm:$0xff]
  %509 = vmatprep.subr.mxu0 0.0
  %510 = vmatpush1.msra.mxu0 %v461
  %511 = vmatprep.subr.mxu0 0.0
  %512 = vmatpush1.msra.mxu0 %v462
  %513 = vmatprep.subr.mxu0 0.0
  %514 = vmatpush1.msra.mxu0 %v463
  %515 = vmatprep.subr.mxu0 0.0
  %516 = vmatpush1.msra.mxu0 %v464
  %517 = vmatprep.subr.mxu0 0.0
  %518 = vmatpush1.msra.mxu0 %v465
  %519 = vmatprep.subr.mxu0 0.0
  %520 = vmatpush1.msra.mxu0 %v466
  %521 = vmatprep.subr.mxu0 0.0
  %522 = vmatpush1.msra.mxu0 %v467
  %523 = vmatprep.subr.mxu0 0.0
  %524 = vmatpush1.msra.mxu0 %v468
  %525 = vmatprep.subr.mxu0 0.0
  %526 = vmatpush1.msra.mxu0 %v469
  %527 = vmatprep.subr.mxu0 0.0
  %528 = vmatpush1.msra.mxu0 %v470
  %529 = vmatprep.subr.mxu0 0.0
  %530 = vmatpush1.msra.mxu0 %v471
  %531 = vmatprep.subr.mxu0 0.0
  %532 = vmatpush1.msra.mxu0 %v472
  %533 = vmatprep.subr.mxu0 0.0
  %534 = vmatpush1.msra.mxu0 %v473
  %535 = vmatprep.subr.mxu0 0.0
  %536 = vmatpush1.msra.mxu0 %v474
  %537 = vmatprep.subr.mxu0 0.0
  %538 = vmatpush1.msra.mxu0 %v475
  %539 = vmatprep.subr.mxu0 0.0
  %540 = vmatpush1.msra.mxu0 %v476
  %541 = vmatprep.subr.mxu0 0.0
  %542 = vmatpush1.msra.mxu0 %v477
  %543 = vmatprep.subr.mxu0 0.0
  %544 = vmatpush1.msra.mxu0 %v478
  %545 = vmatprep.subr.mxu0 0.0
  %546 = vmatpush1.msra.mxu0 %v479
  %547 = vmatprep.subr.mxu0 0.0
  %548 = vmatpush1.msra.mxu0 %v480
  %549 = vmatprep.subr.mxu0 0.0
  %550 = vmatpush1.msra.mxu0 %v481
  %551 = vmatprep.subr.mxu0 0.0
  %552 = vmatpush1.msra.mxu0 %v482
  %553 = vmatprep.subr.mxu0 0.0
  %554 = vmatpush1.msra.mxu0 %v483
  %555 = vmatprep.subr.mxu0 0.0
  %556 = vmatpush1.msra.mxu0 %v484
  %557 = vmatprep.subr.mxu0 0.0
  %558 = vmatpush1.msra.mxu0 %v485
  %559 = vmatprep.subr.mxu0 0.0
  %560 = vmatpush1.msra.mxu0 %v486
  %561 = vmatprep.subr.mxu0 0.0
  %562 = vmatpush1.msra.mxu0 %v487
  %563 = vmatprep.subr.mxu0 0.0
  %564 = vmatpush1.msra.mxu0 %v488
  %565 = vmatprep.subr.mxu0 0.0
  %566 = vmatpush1.msra.mxu0 %v489
  %567 = vmatprep.subr.mxu0 0.0
  %568 = vmatpush1.msra.mxu0 %v490
  %569 = vmatprep.subr.mxu0 0.0
  %570 = vmatpush1.msra.mxu0 %v491
  %571 = vmatprep.subr.mxu0 0.0
  %572 = vmatpush1.msra.mxu0 %v492
  %573 = vmatprep.mubr.f32.mxu0 %v451
  %574 = vmatmul.mubr.f32.gmra.mrb[0].mxu0 %v445
  %v575 = vpop.f32.mrb[0].mxu0
  %v576 = vadd.f32 0.0, %v575
  %v577 = vpop.f32.mrb[0].mxu0
  %578 = vdwg.mxu0
  %579 = vmatprep.subr.mxu0 0.0
  %580 = vmatpush1.msra.mxu0 %v493
  %581 = vmatprep.subr.mxu0 0.0
  %582 = vmatpush1.msra.mxu0 %v494
  %583 = vmatprep.subr.mxu0 0.0
  %584 = vmatpush1.msra.mxu0 %v495
  %585 = vmatprep.subr.mxu0 0.0
  %586 = vmatpush1.msra.mxu0 %v496
  %587 = vmatprep.subr.mxu0 0.0
  %588 = vmatpush1.msra.mxu0 %v497
  %589 = vmatprep.subr.mxu0 0.0
  %590 = vmatpush1.msra.mxu0 %v498
  %591 = vmatprep.subr.mxu0 0.0
  %592 = vmatpush1.msra.mxu0 %v499
  %593 = vmatprep.subr.mxu0 0.0
  %594 = vmatpush1.msra.mxu0 %v500
  %595 = vmatprep.subr.mxu0 0.0
  %596 = vmatpush1.msra.mxu0 %v501
  %597 = vmatprep.subr.mxu0 0.0
  %598 = vmatpush1.msra.mxu0 %v502
  %599 = vmatprep.subr.mxu0 0.0
  %600 = vmatpush1.msra.mxu0 %v503
  %601 = vmatprep.subr.mxu0 0.0
  %602 = vmatpush1.msra.mxu0 %v504
  %603 = vmatprep.subr.mxu0 0.0
  %604 = vmatpush1.msra.mxu0 %v505
  %605 = vmatprep.subr.mxu0 0.0
  %606 = vmatpush1.msra.mxu0 %v506
  %607 = vmatprep.subr.mxu0 0.0
  %608 = vmatpush1.msra.mxu0 %v507
  %609 = vmatprep.subr.mxu0 0.0
  %610 = vmatpush1.msra.mxu0 %v508
  %611 = vmatprep.subr.mxu0 0.0
  %612 = vmatpush1.msra.mxu0 0.0
  %613 = vmatprep.subr.mxu0 0.0
  %614 = vmatpush1.msra.mxu0 0.0
  %615 = vmatprep.subr.mxu0 0.0
  %616 = vmatpush1.msra.mxu0 0.0
  %617 = vmatprep.subr.mxu0 0.0
  %618 = vmatpush1.msra.mxu0 0.0
  %619 = vmatprep.subr.mxu0 0.0
  %620 = vmatpush1.msra.mxu0 0.0
  %621 = vmatprep.subr.mxu0 0.0
  %622 = vmatpush1.msra.mxu0 0.0
  %623 = vmatprep.subr.mxu0 0.0
  %624 = vmatpush1.msra.mxu0 0.0
  %625 = vmatprep.subr.mxu0 0.0
  %626 = vmatpush1.msra.mxu0 0.0
  %627 = vmatprep.subr.mxu0 0.0
  %628 = vmatpush1.msra.mxu0 0.0
  %629 = vmatprep.subr.mxu0 0.0
  %630 = vmatpush1.msra.mxu0 0.0
  %631 = vmatprep.subr.mxu0 0.0
  %632 = vmatpush1.msra.mxu0 0.0
  %633 = vmatprep.subr.mxu0 0.0
  %634 = vmatpush1.msra.mxu0 0.0
  %635 = vmatprep.subr.mxu0 0.0
  %636 = vmatpush1.msra.mxu0 0.0
  %637 = vmatprep.subr.mxu0 0.0
  %638 = vmatpush1.msra.mxu0 0.0
  %639 = vmatprep.subr.mxu0 0.0
  %640 = vmatpush1.msra.mxu0 0.0
  %641 = vmatprep.subr.mxu0 0.0
  %642 = vmatpush1.msra.mxu0 0.0
  %643 = vmatprep.mubr.f32.mxu0 0.0
  %644 = vmatmul.mubr.f32.gmra.mrb[0].mxu0 %v457
  %v645 = vpop.f32.mrb[0].mxu0
  %v646 = vadd.f32 %v576, %v645
  %v647 = vpop.f32.mrb[0].mxu0
  %648 = vdwg.mxu0
  %649 = vst [vmem:[%s6] sm:$0xff] %v646
  // Predicated region
  $region22: #{smpl_forward.1} parent=0 // pred_check
    _
  $region23: #{smpl_forward.1} parent=0 // pred_check_branch
    %651 = sbr.rel (0) target = $region25
  $region24: #{smpl_forward.1} parent=0 // pred_region
    _
  $region25: #{smpl_forward.1} parent=0 // pred_fallthru
    _
  // Predicated region
  $region26: #{smpl_forward.1} parent=0 // pred_check
    _
  $region27: #{smpl_forward.1} parent=0 // pred_check_branch
    %653 = sbr.rel (0) target = $region29
  $region28: #{smpl_forward.1} parent=0 // pred_region
    _
  $region29: #{smpl_forward.1} parent=0 // pred_fallthru
    _
  // Predicated region
  $region30: #{smpl_forward.1} parent=0 // pred_check
    _
  $region31: #{smpl_forward.1} parent=0 // pred_check_branch
    %655 = sbr.rel (0) target = $region33
  $region32: #{smpl_forward.1} parent=0 // pred_region
    _
  $region33: #{smpl_forward.1} parent=0 // pred_fallthru
    _
  // Predicated region
  $region34: #{smpl_forward.1} parent=0 // pred_check
    _
  $region35: #{smpl_forward.1} parent=0 // pred_check_branch
    %657 = sbr.rel (0) target = $region37
  $region36: #{smpl_forward.1} parent=0 // pred_region
    _
  $region37: #{smpl_forward.1} parent=0 // pred_fallthru
    _

</llo_original>
